<compile_context>
chip_gen: v6e
topology: v6e:2x2x1
jax: 0.10.0
libtpu: 0.0.40
codegen_flags: <defaults>
</compile_context>

<pallas_src>
import jax
import jax.numpy as jnp
from jax import lax
from jax.experimental import pallas as pl
from jax.experimental.pallas import tpu as pltpu


def coding_rate(X, eps=0.01):
    """Matches CodingRate.forward: returns (mean_mcr2, stdev)."""
    b, h, m, d = X.shape
    N = b * h
    scalar = float(d) / (float(m) * float(eps))          # p / (m * eps), p == d
    sqrt_scalar = scalar ** 0.5

    # Pack all head rows into a single (N*m, d) slab.
    Xr = X.reshape(N * m, d).astype(jnp.float32)

    # Heads per block: pack up to 128 rows per block (sublane packing -> one big
    # MXU pass, lane-dense output), but keep >= 2 grid steps when N allows so
    # both v7x TensorCores are used.
    max_g = max(1, 128 // m) if m <= 128 else 1
    G = max(1, min(max_g, N // 2)) if N >= 2 else 1
    while N % G != 0:                                     # G must divide N
        G -= 1
    if (G * m) % 8 != 0 and G != N:                       # sublane (8) constraint
        G = N                                             # fall back to full extent
    num_blocks = N // G
    P = G * m                                             # rows per block

    def kernel(x_ref, g_ref):
        x = x_ref[...]                                    # (P, d) f32
        # Row-wise L2 normalization, sqrt(scalar) folded into the same multiply.
        inv = lax.rsqrt(jnp.sum(x * x, axis=-1, keepdims=True))   # EUP rsqrt
        xn = x * (inv * jnp.float32(sqrt_scalar))
        # One packed MXU pass: Gram over all G heads' rows (already scaled).
        g_ref[0] = lax.dot_general(
            xn, xn,
            dimension_numbers=(((1,), (1,)), ((), ())),
            preferred_element_type=jnp.float32,
        )                                                 # (P, P)

    Gp = pl.pallas_call(
        kernel,
        out_shape=jax.ShapeDtypeStruct((num_blocks, P, P), jnp.float32),
        grid=(num_blocks,),
        in_specs=[pl.BlockSpec((P, d), lambda i: (i, 0))],
        out_specs=pl.BlockSpec((1, P, P), lambda i: (i, 0, 0)),
        compiler_params=pltpu.CompilerParams(
            dimension_semantics=("parallel",)),
    )(Xr)

    # Extract the per-head diagonal (m, m) blocks of the packed Gram and add I.
    Gd = jnp.diagonal(Gp.reshape(num_blocks, G, m, G, m), axis1=1, axis2=3)
    Gd = jnp.moveaxis(Gd, -1, 1).reshape(N, m, m)         # (N, m, m)
    A = Gd + jnp.eye(m, dtype=jnp.float32)                # I + scalar * Xn Xn^T

    # A is SPD -> Cholesky-based logdet (cheaper than pivoted-LU slogdet).
    # NOTE: zero-norm input rows give NaN (matches torch.norm-divide behavior).
    L = jnp.linalg.cholesky(A)
    logdet = 2.0 * jnp.sum(
        jnp.log(jnp.diagonal(L, axis1=-2, axis2=-1)), axis=-1)     # (N,)

    logdet2 = logdet.reshape(b, h)                        # (b, h)
    mcr2s = jnp.sum(logdet2, axis=-1) / 2.0               # (b,)
    mean_mcr2 = jnp.mean(mcr2s)
    # torch.std defaults to the unbiased (Bessel-corrected) estimator.
    # NOTE: like torch, this is NaN when b == 1.
    stdev = jnp.std(mcr2s, ddof=1)
    return mean_mcr2, stdev


if __name__ == "__main__":
    key = jax.random.PRNGKey(0)
    b, h, m, d = 2, 4, 8, 32
    X = jax.random.normal(key, (b, h, m, d), dtype=jnp.float32)
    mean_mcr2, stdev = coding_rate(X, eps=0.01)
    jax.block_until_ready((mean_mcr2, stdev))
    print("KERNEL_OK")
</pallas_src>

<mosaic_0001>
module attributes {stable_mosaic.version = 11 : i64} {
  func.func @kernel(%arg0: i32, %arg1: memref<32x32xf32, #tpu.memory_space<vmem>>, %arg2: memref<1x32x32xf32, #tpu.memory_space<vmem>>) attributes {dimension_semantics = [#tpu.dimension_semantics<parallel>], iteration_bounds = array<i64: 2>, scalar_prefetch = 0 : i64, scratch_operands = 0 : i64, tpu.core_type = #tpu.core_type<tc>, window_params = [{transform_indices = @transform_0, window_bounds = array<i64: 32, 32>}, {transform_indices = @transform_1, window_bounds = array<i64: 1, 32, 32>}]} {
    %c0 = arith.constant 0 : index
    %c0_0 = arith.constant 0 : index
    %0 = vector.load %arg1[%c0, %c0_0] : memref<32x32xf32, #tpu.memory_space<vmem>>, vector<32x32xf32>
    %1 = arith.mulf %0, %0 : vector<32x32xf32>
    %cst = arith.constant dense<0.000000e+00> : vector<32xf32>
    %2 = vector.multi_reduction <add>, %1, %cst [1] : vector<32x32xf32> to vector<32xf32>
    %3 = vector.shape_cast %2 : vector<32xf32> to vector<32x1xf32>
    %4 = math.rsqrt %3 : vector<32x1xf32>
    %cst_1 = arith.constant 2.000000e+01 : f32
    %5 = vector.broadcast %cst_1 : f32 to vector<32x1xf32>
    %6 = arith.mulf %4, %5 : vector<32x1xf32>
    %7 = vector.broadcast %6 : vector<32x1xf32> to vector<32x32xf32>
    %8 = arith.mulf %0, %7 : vector<32x32xf32>
    %cst_2 = arith.constant dense<0.000000e+00> : vector<32x32xf32>
    %9 = tpu.matmul %8, %8, %cst_2 {dimension_numbers = #tpu.dot_dimension_numbers<[1], [1], [0], [0], [0, 0, 1, 0], [], []>} : vector<32x32xf32>, vector<32x32xf32>, vector<32x32xf32> -> vector<32x32xf32>
    %c0_3 = arith.constant 0 : index
    %c0_4 = arith.constant 0 : index
    %c0_5 = arith.constant 0 : index
    %10 = vector.load %arg2[%c0_3, %c0_4, %c0_5] : memref<1x32x32xf32, #tpu.memory_space<vmem>>, vector<1x32x32xf32>
    %11 = vector.shape_cast %10 : vector<1x32x32xf32> to vector<32x32xf32>
    %12 = vector.shape_cast %9 : vector<32x32xf32> to vector<1x32x32xf32>
    tpu.vector_store %arg2[%c0_3, %c0_4, %c0_5], %12 {strides = array<i32>} : memref<1x32x32xf32, #tpu.memory_space<vmem>>, vector<1x32x32xf32>,
    return
  }
  func.func @transform_0(%arg0: i32) -> (i32, i32) {
    %c0_i32 = arith.constant 0 : i32
    %c0_i32_0 = arith.constant 0 : i32
    return %arg0, %c0_i32 : i32, i32
  }
  func.func @transform_1(%arg0: i32) -> (i32, i32, i32) {
    %c0_i32 = arith.constant 0 : i32
    %c0_i32_0 = arith.constant 0 : i32
    %c0_i32_1 = arith.constant 0 : i32
    return %arg0, %c0_i32, %c0_i32_0 : i32, i32, i32
  }
}

</mosaic_0001>

<llo_original>
// kernel: tpu_custom_call.1
$region0: #{tpu_custom_call.1}
  #allocation0 [shape = 'u32[]', space=smem, size = 0x4, offset = 0x4, fixed_abs, tag = 'smem constant byte address 0x4 - core index']
  #allocation1 [shape = 'u32[144,128]{1,0:T(1,128)}', space=vmem, size = 0x12000, scoped, tag = 'internal scratch']
  %s0 = inlined_call_operand.vmem [shape: f32[64,32], index: 0, kind: input, shape index: {}]
  %s1 = inlined_call_operand.hbm [shape: f32[2,32,32], index: 1, kind: output, shape index: {}]
  %s2 = sld [smem:[#allocation0]]
  $region37: #{tpu_custom_call.1} parent=0
    _
  %s4 = ssub.s32 1, %s2
  %s5 = scalar_select 0, %s4, %s2
  $region1: #{tpu_custom_call.1} parent=0
    #allocation2 [shape = 'u8[32768]{0}', space=vmem, size = 0x8000, scoped, tag = 'output window, operand 0']
    #allocation3 [shape = 's32[2]{0}', space=sflag, size = 0x8, scoped, tag = 'scoped memory for tpu_custom_call.1']
    %6 = vsyncpa [#allocation3], 0
    %s7 = scalar_lea.sflag [#allocation3], 1
    %8 = vsyncpa %s7, 0
    loop: start=0, step=1, limit=4
    $region2: #{tpu_custom_call.1} parent=1 // loop_pre_header
      _
    $region3: #{tpu_custom_call.1} parent=1 // loop_header
      %s10 = sphi 0, %s14
      %p11 = scmp.ge.s32.totalorder %s10, 4
      %s20 = sphi 0, %s22
      %s23 = sphi 0, %s20
      %s24 = sphi 0, %s23
      %s40 = sphi 0, %s24
      %s46 = sphi 0, %s48
      %s49 = sphi 0, %s46
      %s50 = sphi 0, %s49
      %s66 = sphi 0, %s50
    $region4: #{tpu_custom_call.1} parent=1 // loop_header_branch
      %13 = sbr.rel (%p11) target = $region8
    $region5: #{tpu_custom_call.1} parent=1 // loop_body
      %s15 = ssub.s32 %s10, 1
      %s16 = ssub.s32 %s10, 2
      %s17 = sadd.s32 %s10, 1
      %s18 = ssub.s32 %s10, %s17
      %p19 = scmp.eq.s32.totalorder %s18, 0
      %s21 = sadd.s32 %s20, 1
      %s22 = scalar_select %p19, %s20, %s21
      %p25 = pneg %p19
      %p26 = scmp.eq.s32.totalorder %s10, 1
      %p27 = por %p25, %p26
      %p28 = scmp.ne.s32.totalorder %s20, %s23
      %p29 = scmp.eq.s32.totalorder %s10, 0
      %p30 = por %p28, %p29
      %p31 = scmp.ne.s32.totalorder %s20, %s23
      %p32 = scmp.eq.s32.totalorder %s15, 1
      %p33 = por %p31, %p32
      %p34 = scmp.ne.s32.totalorder %s23, %s24
      %p35 = scmp.eq.s32.totalorder %s15, 0
      %p36 = por %p34, %p35
      %p37 = scmp.ne.s32.totalorder %s23, %s24
      %p38 = scmp.eq.s32.totalorder %s16, 1
      %p39 = por %p37, %p38
      %p41 = scmp.ne.s32.totalorder %s24, %s40
      %p42 = scmp.eq.s32.totalorder %s16, 0
      %p43 = por %p41, %p42
      %s44 = ssub.s32 %s10, %s17
      %p45 = scmp.eq.s32.totalorder %s44, 0
      %s47 = sadd.s32 %s46, 1
      %s48 = scalar_select %p45, %s46, %s47
      %p51 = pneg %p45
      %p52 = scmp.eq.s32.totalorder %s10, 1
      %p53 = por %p51, %p52
      %p54 = scmp.ne.s32.totalorder %s46, %s49
      %p55 = scmp.eq.s32.totalorder %s10, 0
      %p56 = por %p54, %p55
      %p57 = scmp.ne.s32.totalorder %s46, %s49
      %p58 = scmp.eq.s32.totalorder %s15, 1
      %p59 = por %p57, %p58
      %p60 = scmp.ne.s32.totalorder %s49, %s50
      %p61 = scmp.eq.s32.totalorder %s15, 0
      %p62 = por %p60, %p61
      %p63 = scmp.ne.s32.totalorder %s49, %s50
      %p64 = scmp.eq.s32.totalorder %s16, 1
      %p65 = por %p63, %p64
      %p67 = scmp.ne.s32.totalorder %s50, %s66
      %p68 = scmp.eq.s32.totalorder %s16, 0
      %p69 = por %p67, %p68
      %p70 = scmp.le.s32.totalorder 1, %s10
      %p71 = scmp.lt.s32.totalorder %s10, 3
      %p72 = pnand %p70, %p71
      %p73 = pneg %p72
      // Predicated region
      $region9: #{tpu_custom_call.1} parent=5 // pred_check
        _
      $region10: #{tpu_custom_call.1} parent=5 // pred_check_branch
        %75 = sbr.rel (%p72) target = $region12
      $region11: #{tpu_custom_call.1} parent=5 // pred_region
        %s76 = ssub.s32 %s10, 1
      $region12: #{tpu_custom_call.1} parent=5 // pred_fallthru
        _
      %p77 = scmp.lt.s32.totalorder %s10, 2
      // Predicated region
      $region13: #{tpu_custom_call.1} parent=5 // pred_check
        %p78 = pneg %p77
      $region14: #{tpu_custom_call.1} parent=5 // pred_check_branch
        %80 = sbr.rel (%p78) target = $region16
      $region15: #{tpu_custom_call.1} parent=5 // pred_region
        // Predicated region
        $region17: #{tpu_custom_call.1} parent=15 // pred_check
          %p81 = pneg %p30
        $region18: #{tpu_custom_call.1} parent=15 // pred_check_branch
          %83 = sbr.rel (%p81) target = $region20
        $region19: #{tpu_custom_call.1} parent=15 // pred_region
          %s84 = smul.u32 4, %s10
          %p85 = scmp.lt.s32.totalorder %s84, 7
          %s86 = scalar_select %p85, %s84, 7
          %s87 = smul.addr %s86, 8
          %s88 = scalar_lea.vmem %s0, %s87
          %s89 = smul.u32 4, %s10
        $region20: #{tpu_custom_call.1} parent=15 // pred_fallthru
          _
      $region16: #{tpu_custom_call.1} parent=5 // pred_fallthru
        _
      %p90 = scmp.le.s32.totalorder 1, %s10
      %p91 = scmp.lt.s32.totalorder %s10, 3
      %p92 = pnand %p90, %p91
      %p93 = pneg %p92
      // Predicated region
      $region21: #{tpu_custom_call.1} parent=5 // pred_check
        _
      $region22: #{tpu_custom_call.1} parent=5 // pred_check_branch
        %95 = sbr.rel (%p92) target = $region24
      $region23: #{tpu_custom_call.1} parent=5 // pred_region
        %s96 = ssub.s32 %s10, 1
        %s97 = smul.u32 4, %s15
        %p98 = scmp.lt.s32.totalorder %s97, 7
        %s99 = scalar_select %p98, %s97, 7
        %s100 = smul.addr %s99, 8
        %s101 = scalar_lea.vmem %s0, %s100
        %p102 = pneg %p36
        %p103 = pneg %p33
        %p104 = pneg %p62
        %p105 = pneg %p59
        %s106 = sand.u32 %s49, 1
        %s107 = scalar_lea.sflag [#allocation3], %s106
        %s108 = sand.u32 %s49, 1
        %s109 = smul.addr %s108, 32
        %s110 = scalar_lea.vmem [#allocation2], %s109
        %s111 = smul.u32 4, %s15
        %p112 = scmp.lt.s32.totalorder %s111, 7
        %s113 = scalar_select %p112, %s111, 7
        %s114 = smul.addr %s113, 8
        %s115 = scalar_lea.vmem %s0, %s114
        %s116 = smul.u32 4, %s15
        %v117 = vld [vmem:[%s115] sm:$0xff]
        %v118 = vld [vmem:[%s115 + $0x8] sm:$0xff]
        %v119 = vld [vmem:[%s115 + $0x10] sm:$0xff]
        %v120 = vld [vmem:[%s115 + $0x18] sm:$0xff]
        %v121 = vmul.f32 %v117, %v117
        %v122 = vmul.f32 %v118, %v118
        %v123 = vmul.f32 %v119, %v119
        %v124 = vmul.f32 %v120, %v120
        %vm125 = vcmask 261120
        %v126 = vsel %vm125, %v121, 0.0
        %127 = vadd.xlane.f32.xlu0 %v126
        %v128 = vpop.xlane.xlu0 %127
        %v129 = vsel %vm125, %v122, 0.0
        %130 = vadd.xlane.f32.xlu0 %v129
        %v131 = vpop.xlane.xlu0 %130
        %v132 = vsel %vm125, %v123, 0.0
        %133 = vadd.xlane.f32.xlu0 %v132
        %v134 = vpop.xlane.xlu0 %133
        %v135 = vsel %vm125, %v124, 0.0
        %136 = vadd.xlane.f32.xlu0 %v135
        %v137 = vpop.xlane.xlu0 %136
        %v138 = vrsqrt.pop %v128
        %v139 = vrsqrt.pop %v131
        %v140 = vrsqrt.pop %v134
        %v141 = vrsqrt.pop %v137
        %v142 = vmul.f32 %v138, 20.0
        %v143 = vmul.f32 %v139, 20.0
        %v144 = vmul.f32 %v140, 20.0
        %v145 = vmul.f32 %v141, 20.0
        %v146 = vmul.f32 %v117, %v142
        %v147 = vmul.f32 %v118, %v143
        %v148 = vmul.f32 %v119, %v144
        %v149 = vmul.f32 %v120, %v145
        %v151 = vsel %vm125, %v146, 0
        %v154 = vsel %vm125, %v147, 0
        %v157 = vsel %vm125, %v148, 0
        %v160 = vsel %vm125, %v149, 0
        %162 = vmatprep.subr.mxu0 0.0
        %163 = vmatpush1.xpose.msra.mxu0 0.0
        %164 = vmatprep.subr.mxu0 0.0
        %165 = vmatpush1.xpose.msra.mxu0 0.0
        %166 = vmatprep.subr.mxu0 0.0
        %167 = vmatpush1.xpose.msra.mxu0 0.0
        %168 = vmatprep.subr.mxu0 0.0
        %169 = vmatpush1.xpose.msra.mxu0 0.0
        %170 = vmatprep.subr.mxu0 0.0
        %171 = vmatpush1.xpose.msra.mxu0 0.0
        %172 = vmatprep.subr.mxu0 0.0
        %173 = vmatpush1.xpose.msra.mxu0 0.0
        %174 = vmatprep.subr.mxu0 0.0
        %175 = vmatpush1.xpose.msra.mxu0 0.0
        %176 = vmatprep.subr.mxu0 0.0
        %177 = vmatpush1.xpose.msra.mxu0 0.0
        %178 = vmatprep.subr.mxu0 0.0
        %179 = vmatpush1.xpose.msra.mxu0 0.0
        %180 = vmatprep.subr.mxu0 0.0
        %181 = vmatpush1.xpose.msra.mxu0 0.0
        %182 = vmatprep.subr.mxu0 0.0
        %183 = vmatpush1.xpose.msra.mxu0 0.0
        %184 = vmatprep.subr.mxu0 0.0
        %185 = vmatpush1.xpose.msra.mxu0 0.0
        %186 = vmatprep.subr.mxu0 0.0
        %187 = vmatpush1.xpose.msra.mxu0 %v160
        %188 = vmatprep.subr.mxu0 0.0
        %189 = vmatpush1.xpose.msra.mxu0 %v157
        %190 = vmatprep.subr.mxu0 0.0
        %191 = vmatpush1.xpose.msra.mxu0 %v154
        %192 = vmatprep.subr.mxu0 0.0
        %193 = vmatpush1.xpose.msra.mxu0 %v151
        %194 = vmatprep.subr.mxu0 0.0
        %195 = vmatpush2.xpose.msra.mxu0 0.0
        %196 = vmatprep.subr.mxu0 0.0
        %197 = vmatpush2.xpose.msra.mxu0 0.0
        %198 = vmatprep.subr.mxu0 0.0
        %199 = vmatpush2.xpose.msra.mxu0 0.0
        %200 = vmatprep.subr.mxu0 0.0
        %201 = vmatpush2.xpose.msra.mxu0 0.0
        %202 = vmatprep.subr.mxu0 0.0
        %203 = vmatpush2.xpose.msra.mxu0 0.0
        %204 = vmatprep.subr.mxu0 0.0
        %205 = vmatpush2.xpose.msra.mxu0 0.0
        %206 = vmatprep.subr.mxu0 0.0
        %207 = vmatpush2.xpose.msra.mxu0 0.0
        %208 = vmatprep.subr.mxu0 0.0
        %209 = vmatpush2.xpose.msra.mxu0 0.0
        %210 = vmatprep.subr.mxu0 0.0
        %211 = vmatpush2.xpose.msra.mxu0 0.0
        %212 = vmatprep.subr.mxu0 0.0
        %213 = vmatpush2.xpose.msra.mxu0 0.0
        %214 = vmatprep.subr.mxu0 0.0
        %215 = vmatpush2.xpose.msra.mxu0 0.0
        %216 = vmatprep.subr.mxu0 0.0
        %217 = vmatpush2.xpose.msra.mxu0 0.0
        %218 = vmatprep.subr.mxu0 0.0
        %219 = vmatpush2.xpose.msra.mxu0 0.0
        %220 = vmatprep.subr.mxu0 0.0
        %221 = vmatpush2.xpose.msra.mxu0 0.0
        %222 = vmatprep.subr.mxu0 0.0
        %223 = vmatpush2.xpose.msra.mxu0 0.0
        %224 = vmatprep.subr.mxu0 0.0
        %225 = vmatpush2.xpose.msra.mxu0 0.0
        %226 = vmatprep.mubr.f32.mxu0 0.0
        %227 = vmatmul.mubr.f32.gmra.mxu0 %v151
        %v228 = vpop.f32.mrf.mxu0
        %v229 = vadd.f32 0.0, %v228
        %v230 = vpop.f32.mrf.mxu0
        %231 = vmatprep.mubr.f32.mxu0 0.0
        %232 = vmatmul.mubr.f32.gmra.mxu0 %v154
        %v233 = vpop.f32.mrf.mxu0
        %v234 = vadd.f32 0.0, %v233
        %v235 = vpop.f32.mrf.mxu0
        %236 = vmatprep.mubr.f32.mxu0 0.0
        %237 = vmatmul.mubr.f32.gmra.mxu0 %v157
        %v238 = vpop.f32.mrf.mxu0
        %v239 = vadd.f32 0.0, %v238
        %v240 = vpop.f32.mrf.mxu0
        %241 = vmatprep.mubr.f32.mxu0 0.0
        %242 = vmatmul.mubr.f32.gmra.mxu0 %v160
        %v243 = vpop.f32.mrf.mxu0
        %v244 = vadd.f32 0.0, %v243
        %v245 = vpop.f32.mrf.mxu0
        %246 = vdwg.mxu0
        %247 = vst.msk [vmem:[%s110] sm:$0xff] %vm125, %v229
        %248 = vst.msk [vmem:[%s110 + $0x8] sm:$0xff] %vm125, %v234
        %249 = vst.msk [vmem:[%s110 + $0x10] sm:$0xff] %vm125, %v239
        %250 = vst.msk [vmem:[%s110 + $0x18] sm:$0xff] %vm125, %v244
        %s251 = sand.u32 %s49, 1
        %s252 = scalar_lea.sflag [#allocation3], %s251
        %s253 = sand.u32 %s49, 1
        %s254 = smul.addr %s253, 32
        %s255 = scalar_lea.vmem [#allocation2], %s254
        // Predicated region
        $region25: #{tpu_custom_call.1} parent=23 // pred_check
          %p256 = pneg %p59
        $region26: #{tpu_custom_call.1} parent=23 // pred_check_branch
          %258 = sbr.rel (%p256) target = $region28
        $region27: #{tpu_custom_call.1} parent=23 // pred_region
          %s260 = ssub.s32 512, 512
          %261 = vsyncadd %s252, %s260
          %s262 = smul.addr %s15, 4
          %s263 = smul.addr %s262, 128
          %s264 = scalar_lea.hbm %s1, %s263
          %s265 = sshll.u32 %s255, 4
          %s266 = int_to_ptr.vmem [resolvable:$true] %s265
          %271 = dma.vmem_to_hbm [thread:$0]  %s266, 512, %s264, %s252, 128, 128, 8
        $region28: #{tpu_custom_call.1} parent=23 // pred_fallthru
          _
      $region24: #{tpu_custom_call.1} parent=5 // pred_fallthru
        _
      %p272 = scmp.le.s32.totalorder 2, %s10
      // Predicated region
      $region29: #{tpu_custom_call.1} parent=5 // pred_check
        %p273 = pneg %p272
      $region30: #{tpu_custom_call.1} parent=5 // pred_check_branch
        %275 = sbr.rel (%p273) target = $region32
      $region31: #{tpu_custom_call.1} parent=5 // pred_region
        %s276 = ssub.s32 %s10, 2
        // Predicated region
        $region33: #{tpu_custom_call.1} parent=31 // pred_check
          %p277 = pneg %p65
        $region34: #{tpu_custom_call.1} parent=31 // pred_check_branch
          %279 = sbr.rel (%p277) target = $region36
        $region35: #{tpu_custom_call.1} parent=31 // pred_region
          %s280 = sand.u32 %s50, 1
          %s281 = scalar_lea.sflag [#allocation3], %s280
          %s282 = sand.u32 %s50, 1
          %s283 = smul.addr %s282, 32
          %s284 = scalar_lea.vmem [#allocation2], %s283
          %285 = dma.done %s281, 512
        $region36: #{tpu_custom_call.1} parent=31 // pred_fallthru
          _
      $region32: #{tpu_custom_call.1} parent=5 // pred_fallthru
        _
    $region6: #{tpu_custom_call.1} parent=1 // loop_footer
      %s14 = sadd.s32 1, %s10
    $region7: #{tpu_custom_call.1} parent=1 // loop_footer_branch
      %9 = sbr.rel target = $region3
    $region8: #{tpu_custom_call.1} parent=1 // loop_exit
      _
    %286 = vsyncpa [#allocation3], 1
    %s287 = scalar_lea.sflag [#allocation3], 1
    %288 = vsyncpa %s287, 1

</llo_original>
